<compile_context>
chip_gen: v5e
topology: v5e:2x2
jax: 0.10.0
libtpu: 0.0.40
codegen_flags: <defaults>
</compile_context>

<pallas_src>
import functools
import math

import jax
import jax.numpy as jnp
from jax import lax
from jax.experimental import pallas as pl
from jax.experimental.pallas import tpu as pltpu

# Matmul-operand dtype: bf16 halves weight HBM traffic and doubles MXU lane
# packing on v5e/v6e/v7x; accumulation is always f32 (preferred_element_type).
# Set to jnp.float32 to recover exact f32 matmuls.
MXU_DTYPE = jnp.bfloat16
LN_EPS = 1e-5


# --------------------------------------------------------------------------
# Small in-kernel helpers (pure jnp, traced into the kernels)
# --------------------------------------------------------------------------
def _layernorm(z, g, b, eps=LN_EPS):
    mean = jnp.mean(z, axis=-1, keepdims=True)
    zc = z - mean
    var = jnp.mean(zc * zc, axis=-1, keepdims=True)
    return zc * lax.rsqrt(var + eps) * g + b


def _softmax_lastdim(x):
    m = jnp.max(x, axis=-1, keepdims=True)
    e = jnp.exp(x - m)
    # EUP reciprocal instead of a VPU divide (free slot).
    return e * pl.reciprocal(jnp.sum(e, axis=-1, keepdims=True), approx=True)


def _row_tile(m):
    # Largest 8-aligned tile dividing m (demo shapes are tiny).
    # Real deployments: ~512 rows on v7x (64 MiB VMEM), 1024-2048 on v6e.
    for t in (1024, 512, 256, 128, 64, 32, 16, 8):
        if m % t == 0:
            return t
    return m


# --------------------------------------------------------------------------
# Kernel 1: self-attention + residual + LayerNorm(norm2), grid=(B,)
# --------------------------------------------------------------------------
def _self_attn_ln_kernel(tgt_ref, pos_ref, wqk_ref, bqk_ref, wv_ref, bv_ref,
                         wo_ref, bo_ref, g_ref, beta_ref, o_ref, *, n_heads):
    x = tgt_ref[0]                        # (Lq, D) f32 — also the residual
    qk_in = x + pos_ref[0]                # q = k = tgt + query_pos
    Lq, D = x.shape
    hd = D // n_heads
    scale = 1.0 / math.sqrt(hd)

    # fused q/k projection (single matmul on concatenated weights) + v proj
    qk = jnp.dot(qk_in.astype(MXU_DTYPE), wqk_ref[...],
                 preferred_element_type=jnp.float32) + bqk_ref[...]
    v = jnp.dot(x.astype(MXU_DTYPE), wv_ref[...],
                preferred_element_type=jnp.float32) + bv_ref[...]
    q = qk[:, :D] * scale
    k = qk[:, D:]

    # head-stacked (H, Lq, hd) tensors -> one batched dot per stage
    q3 = jnp.stack([q[:, h * hd:(h + 1) * hd] for h in range(n_heads)], axis=0)
    k3 = jnp.stack([k[:, h * hd:(h + 1) * hd] for h in range(n_heads)], axis=0)
    v3 = jnp.stack([v[:, h * hd:(h + 1) * hd] for h in range(n_heads)], axis=0)

    s = jnp.einsum("hqd,hkd->hqk", q3.astype(MXU_DTYPE), k3.astype(MXU_DTYPE),
                   preferred_element_type=jnp.float32)
    p = _softmax_lastdim(s)               # f32 softmax
    ctx = jnp.einsum("hqk,hkd->hqd", p.astype(MXU_DTYPE), v3.astype(MXU_DTYPE),
                     preferred_element_type=jnp.float32)     # (H, Lq, hd)

    # merge heads (lane-dense (Lq, D)) -> single output projection
    ctx2 = jnp.concatenate([ctx[h] for h in range(n_heads)], axis=-1)
    attn = jnp.dot(ctx2.astype(MXU_DTYPE), wo_ref[...],
                   preferred_element_type=jnp.float32) + bo_ref[...]

    # fused residual + LayerNorm (norm2) epilogue
    o_ref[0] = _layernorm(x + attn, g_ref[...], beta_ref[...])


# --------------------------------------------------------------------------
# Kernel 2: row-tiled linear (value projection), weight resident across grid
# --------------------------------------------------------------------------
def _tiled_linear_kernel(x_ref, w_ref, b_ref, o_ref):
    o_ref[...] = jnp.dot(x_ref[...].astype(w_ref.dtype), w_ref[...],
                         preferred_element_type=jnp.float32) + b_ref[...]


def tiled_linear(x, w, b):
    m, k = x.shape
    n = w.shape[1]
    tm = _row_tile(m)
    return pl.pallas_call(
        _tiled_linear_kernel,
        grid=(m // tm,),
        in_specs=[pl.BlockSpec((tm, k), lambda i: (i, 0)),
                  pl.BlockSpec((k, n), lambda i: (0, 0)),
                  pl.BlockSpec((1, n), lambda i: (0, 0))],
        out_specs=pl.BlockSpec((tm, n), lambda i: (i, 0)),
        out_shape=jax.ShapeDtypeStruct((m, n), jnp.float32),
        compiler_params=pltpu.CompilerParams(dimension_semantics=("parallel",)),
    )(x, w, b)


# --------------------------------------------------------------------------
# Kernel 3: deformable cross-attention + residual + LayerNorm(norm1), grid=(B,)
# --------------------------------------------------------------------------
def _deform_attn_ln_kernel(tgt_ref, pos_ref, refp_ref, val_ref, wqp_ref,
                           bqp_ref, wout_ref, bout_ref, g_ref, beta_ref,
                           o_ref, *, spatial_shapes, n_heads, n_points):
    x = tgt_ref[0]                        # (Lq, D) residual input (post-norm2)
    query = x + pos_ref[0]                # with_pos_embed
    refp = refp_ref[0]                    # (Lq, L*2) normalized ref points
    value = val_ref[0]                    # (Len_in, D) projected value

    Lq, D = x.shape
    H, P = n_heads, n_points
    L = len(spatial_shapes)
    hd = D // H
    n_off = H * L * P * 2

    # fused sampling-offset + attention-weight projection (single matmul,
    # kept f32: the locations feed exact-integer one-hot compares)
    proj = jnp.dot(query, wqp_ref[...],
                   preferred_element_type=jnp.float32) + bqp_ref[...]
    offs = proj[:, :n_off]                # (Lq, H*L*P*2), layout (h, l, p, xy)
    logits = proj[:, n_off:]              # (Lq, H*L*P),   layout (h, l*P + p)

    # per-head softmax over the L*P sampling points (f32)
    aw = [_softmax_lastdim(logits[:, h * L * P:(h + 1) * L * P])
          for h in range(H)]

    acc = jnp.zeros((H, Lq, hd), jnp.float32)
    start = 0
    for l, (Hl, Wl) in enumerate(spatial_shapes):
        hw = Hl * Wl
        # TODO(synk): for real Len_in (>=10k tokens) chunk this level over hw
        # (2048-4096 cols) so the (Lq, hw) interp weights + value slice stay
        # inside v7x's 64 MiB VMEM.
        v_l = value[start:start + hw, :]                       # (hw, D)
        v3 = jnp.stack([v_l[:, h * hd:(h + 1) * hd] for h in range(H)], axis=0)

        # flattened-column -> (x, y) coordinates of this level, built once
        col = lax.broadcasted_iota(jnp.int32, (Lq, hw), 1).astype(jnp.float32)
        ysf = jnp.floor(col / float(Wl))
        xsf = col - ysf * float(Wl)

        ref_x = refp[:, 2 * l:2 * l + 1]                       # (Lq, 1)
        ref_y = refp[:, 2 * l + 1:2 * l + 2]

        w_heads = []
        for h in range(H):
            w_lh = jnp.zeros((Lq, hw), jnp.float32)
            for pt in range(P):
                base = ((h * L + l) * P + pt) * 2
                # loc = ref + off / (W, H); grid_sample(align_corners=False)
                # pixel coord = loc * size - 0.5  ==  ref*size + off - 0.5
                ix = ref_x * Wl + offs[:, base:base + 1] - 0.5
                iy = ref_y * Hl + offs[:, base + 1:base + 2] - 0.5
                x0 = jnp.floor(ix)
                y0 = jnp.floor(iy)
                lx = ix - x0
                ly = iy - y0
                a = aw[h][:, l * P + pt:l * P + pt + 1]        # (Lq, 1)
                # joint 2x2-neighborhood masks; out-of-range rows/cols never
                # match xsf/ysf, which implements zero padding for free.
                wx = ((xsf == x0).astype(jnp.float32) * (1.0 - lx)
                      + (xsf == x0 + 1.0).astype(jnp.float32) * lx)
                wy = ((ysf == y0).astype(jnp.float32) * ((1.0 - ly) * a)
                      + (ysf == y0 + 1.0).astype(jnp.float32) * (ly * a))
                w_lh = w_lh + wx * wy       # attention weight baked in via `a`
            w_heads.append(w_lh)

        # one head-batched matmul per level (all points + weights folded in)
        w3 = jnp.stack(w_heads, axis=0)                        # (H, Lq, hw)
        acc = acc + jnp.einsum("hqs,hsd->hqd", w3.astype(MXU_DTYPE),
                               v3.astype(MXU_DTYPE),
                               preferred_element_type=jnp.float32)
        start += hw

    # merge heads (lane-dense (Lq, D)) -> single output projection
    out_h = jnp.concatenate([acc[h] for h in range(H)], axis=-1)
    attn = jnp.dot(out_h.astype(MXU_DTYPE), wout_ref[...],
                   preferred_element_type=jnp.float32) + bout_ref[...]

    # fused residual + LayerNorm (norm1) epilogue
    o_ref[0] = _layernorm(x + attn, g_ref[...], beta_ref[...])


# --------------------------------------------------------------------------
# Kernel 4: FFN + residual + LayerNorm(norm3), row-tiled
# --------------------------------------------------------------------------
def _ffn_ln_kernel(x_ref, w1_ref, b1_ref, w2_ref, b2_ref, g_ref, beta_ref,
                   o_ref):
    x = x_ref[...]                                             # (TM, D) f32
    h = jnp.maximum(
        jnp.dot(x.astype(MXU_DTYPE), w1_ref[...],
                preferred_element_type=jnp.float32) + b1_ref[...], 0.0)
    y = jnp.dot(h.astype(MXU_DTYPE), w2_ref[...],
                preferred_element_type=jnp.float32) + b2_ref[...]
    o_ref[...] = _layernorm(x + y, g_ref[...], beta_ref[...])


def ffn_layernorm(x, w1, b1, w2, b2, g, beta):
    m, d = x.shape
    dff = w1.shape[1]
    tm = _row_tile(m)
    return pl.pallas_call(
        _ffn_ln_kernel,
        grid=(m // tm,),
        in_specs=[pl.BlockSpec((tm, d), lambda i: (i, 0)),
                  pl.BlockSpec((d, dff), lambda i: (0, 0)),
                  pl.BlockSpec((1, dff), lambda i: (0, 0)),
                  pl.BlockSpec((dff, d), lambda i: (0, 0)),
                  pl.BlockSpec((1, d), lambda i: (0, 0)),
                  pl.BlockSpec((1, d), lambda i: (0, 0)),
                  pl.BlockSpec((1, d), lambda i: (0, 0))],
        out_specs=pl.BlockSpec((tm, d), lambda i: (i, 0)),
        out_shape=jax.ShapeDtypeStruct((m, d), jnp.float32),
        compiler_params=pltpu.CompilerParams(dimension_semantics=("parallel",)),
    )(x, w1, b1, w2, b2, g, beta)


# --------------------------------------------------------------------------
# Full decoder-layer forward (is_contrastive=False path; dropout = identity)
# --------------------------------------------------------------------------
def deformable_decoder_layer_forward(params, idx, tgt, query_pos,
                                     reference_points_def, src,
                                     src_spatial_shapes, *, n_heads, n_points):
    # TODO(synk): self_attn_mask / src_padding_mask / is_contrastive branch not
    # exercised (all None/False in this synthetic setup).
    B, Lq, D = tgt.shape
    Len_in = src.shape[1]
    L = len(src_spatial_shapes)

    seq_spec = pl.BlockSpec((1, Lq, D), lambda b: (b, 0, 0))

    def const_spec(shape):
        return pl.BlockSpec(shape, lambda b: (0,) * len(shape))

    # ---- 1) self-attention + residual + norm2 (fused) ---------------------
    sa = params["self_attn"]
    w_qk = jnp.concatenate([sa["wq"], sa["wk"]], axis=1).astype(MXU_DTYPE)
    b_qk = jnp.concatenate([sa["bq"], sa["bk"]], axis=1)
    tgt = pl.pallas_call(
        functools.partial(_self_attn_ln_kernel, n_heads=n_heads),
        grid=(B,),
        in_specs=[seq_spec, seq_spec,
                  const_spec((D, 2 * D)), const_spec((1, 2 * D)),
                  const_spec((D, D)), const_spec((1, D)),
                  const_spec((D, D)), const_spec((1, D)),
                  const_spec((1, D)), const_spec((1, D))],
        out_specs=seq_spec,
        out_shape=jax.ShapeDtypeStruct((B, Lq, D), jnp.float32),
        compiler_params=pltpu.CompilerParams(dimension_semantics=("parallel",)),
    )(tgt, query_pos, w_qk, b_qk, sa["wv"].astype(MXU_DTYPE), sa["bv"],
      sa["wo"].astype(MXU_DTYPE), sa["bo"],
      params["norm2"]["g"], params["norm2"]["b"])

    # ---- 2) value projection (largest matmul): row-tiled, weight resident -
    ca = params["cross_attn"]
    value = tiled_linear(src.reshape(B * Len_in, D),
                         ca["w_val"].astype(MXU_DTYPE),
                         ca["b_val"]).reshape(B, Len_in, D)

    # ---- 3) deformable cross-attention + residual + norm1 (fused) ---------
    n_cat = n_heads * L * n_points * 3          # 2 offset cols + 1 weight col
    w_qp = jnp.concatenate([ca["w_off"], ca["w_aw"]], axis=1)   # keep f32
    b_qp = jnp.concatenate([ca["b_off"], ca["b_aw"]], axis=1)
    refp = reference_points_def.reshape(B, Lq, L * 2)
    tgt = pl.pallas_call(
        functools.partial(
            _deform_attn_ln_kernel,
            spatial_shapes=tuple(tuple(s) for s in src_spatial_shapes),
            n_heads=n_heads, n_points=n_points),
        grid=(B,),
        in_specs=[seq_spec, seq_spec,
                  pl.BlockSpec((1, Lq, L * 2), lambda b: (b, 0, 0)),
                  pl.BlockSpec((1, Len_in, D), lambda b: (b, 0, 0)),
                  const_spec((D, n_cat)), const_spec((1, n_cat)),
                  const_spec((D, D)), const_spec((1, D)),
                  const_spec((1, D)), const_spec((1, D))],
        out_specs=seq_spec,
        out_shape=jax.ShapeDtypeStruct((B, Lq, D), jnp.float32),
        compiler_params=pltpu.CompilerParams(dimension_semantics=("parallel",)),
    )(tgt, query_pos, refp, value, w_qp, b_qp,
      ca["w_out"].astype(MXU_DTYPE), ca["b_out"],
      params["norm1"]["g"], params["norm1"]["b"])

    # ---- 4) FFN + residual + norm3 (fused, row-tiled) ----------------------
    ffn = params["ffn"]
    tgt = ffn_layernorm(tgt.reshape(B * Lq, D),
                        ffn["w1"].astype(MXU_DTYPE), ffn["b1"],
                        ffn["w2"].astype(MXU_DTYPE), ffn["b2"],
                        params["norm3"]["g"], params["norm3"]["b"]
                        ).reshape(B, Lq, D)
    return tgt


# --------------------------------------------------------------------------
# Deterministic synthetic parameters
# --------------------------------------------------------------------------
def init_params(key, d_model, d_ffn, n_heads, n_levels, n_points):
    ks = iter(jax.random.split(key, 32))

    def W(shape, scale=0.05):
        return scale * jax.random.normal(next(ks), shape, jnp.float32)

    ones = jnp.ones((1, d_model), jnp.float32)
    zeros = jnp.zeros((1, d_model), jnp.float32)
    return {
        "self_attn": dict(
            wq=W((d_model, d_model)), wk=W((d_model, d_model)),
            wv=W((d_model, d_model)),
            bq=W((1, d_model), 0.01), bk=W((1, d_model), 0.01),
            bv=W((1, d_model), 0.01),
            wo=W((d_model, d_model)), bo=W((1, d_model), 0.01)),
        "norm1": dict(g=ones, b=zeros),
        "norm2": dict(g=ones, b=zeros),
        "norm3": dict(g=ones, b=zeros),
        "cross_attn": dict(
            w_off=W((d_model, n_heads * n_levels * n_points * 2)),
            b_off=W((1, n_heads * n_levels * n_points * 2), 0.1),
            w_aw=W((d_model, n_heads * n_levels * n_points)),
            b_aw=W((1, n_heads * n_levels * n_points), 0.01),
            w_val=W((d_model, d_model)), b_val=W((1, d_model), 0.01),
            w_out=W((d_model, d_model)), b_out=W((1, d_model), 0.01)),
        "ffn": dict(
            w1=W((d_model, d_ffn)), b1=W((1, d_ffn), 0.01),
            w2=W((d_ffn, d_model)), b2=W((1, d_model), 0.01)),
    }


if __name__ == "__main__":
    d_model, d_ffn = 32, 64
    n_heads, n_levels, n_points = 4, 2, 2
    B, Lq = 2, 8
    spatial_shapes = ((4, 4), (2, 2))          # (H, W) per level
    Len_in = sum(h * w for h, w in spatial_shapes)

    key = jax.random.PRNGKey(0)
    k_par, k_tgt, k_pos, k_ref, k_src = jax.random.split(key, 5)
    params = init_params(k_par, d_model, d_ffn, n_heads, n_levels, n_points)

    tgt = jax.random.normal(k_tgt, (B, Lq, d_model), jnp.float32)
    query_pos = jax.random.normal(k_pos, (B, Lq, d_model), jnp.float32)
    reference_points_def = jax.random.uniform(
        k_ref, (B, Lq, n_levels, 2), jnp.float32)
    src = jax.random.normal(k_src, (B, Len_in, d_model), jnp.float32)

    out = deformable_decoder_layer_forward(
        params, 0, tgt, query_pos, reference_points_def, src, spatial_shapes,
        n_heads=n_heads, n_points=n_points)
    jax.block_until_ready(out)
    assert out.shape == (B, Lq, d_model)
    assert bool(jnp.all(jnp.isfinite(out)))
    print("KERNEL_OK")
</pallas_src>

<mosaic_0001>
module attributes {stable_mosaic.version = 11 : i64} {
  func.func @_self_attn_ln_kernel(%arg0: i32, %arg1: memref<1x8x32xf32, #tpu.memory_space<vmem>>, %arg2: memref<1x8x32xf32, #tpu.memory_space<vmem>>, %arg3: memref<32x64xbf16, #tpu.memory_space<vmem>>, %arg4: memref<1x64xf32, #tpu.memory_space<vmem>>, %arg5: memref<32x32xbf16, #tpu.memory_space<vmem>>, %arg6: memref<1x32xf32, #tpu.memory_space<vmem>>, %arg7: memref<32x32xbf16, #tpu.memory_space<vmem>>, %arg8: memref<1x32xf32, #tpu.memory_space<vmem>>, %arg9: memref<1x32xf32, #tpu.memory_space<vmem>>, %arg10: memref<1x32xf32, #tpu.memory_space<vmem>>, %arg11: memref<1x8x32xf32, #tpu.memory_space<vmem>>) attributes {dimension_semantics = [#tpu.dimension_semantics<parallel>], iteration_bounds = array<i64: 2>, scalar_prefetch = 0 : i64, scratch_operands = 0 : i64, tpu.core_type = #tpu.core_type<tc>, window_params = [{transform_indices = @transform_0, window_bounds = array<i64: 1, 8, 32>}, {transform_indices = @transform_1, window_bounds = array<i64: 1, 8, 32>}, {pipeline_mode = #tpu.pipeline_mode<synchronous>, transform_indices = @transform_2, window_bounds = array<i64: 32, 64>}, {pipeline_mode = #tpu.pipeline_mode<synchronous>, transform_indices = @transform_3, window_bounds = array<i64: 1, 64>}, {pipeline_mode = #tpu.pipeline_mode<synchronous>, transform_indices = @transform_4, window_bounds = array<i64: 32, 32>}, {pipeline_mode = #tpu.pipeline_mode<synchronous>, transform_indices = @transform_5, window_bounds = array<i64: 1, 32>}, {pipeline_mode = #tpu.pipeline_mode<synchronous>, transform_indices = @transform_6, window_bounds = array<i64: 32, 32>}, {pipeline_mode = #tpu.pipeline_mode<synchronous>, transform_indices = @transform_7, window_bounds = array<i64: 1, 32>}, {pipeline_mode = #tpu.pipeline_mode<synchronous>, transform_indices = @transform_8, window_bounds = array<i64: 1, 32>}, {pipeline_mode = #tpu.pipeline_mode<synchronous>, transform_indices = @transform_9, window_bounds = array<i64: 1, 32>}, {transform_indices = @transform_10, window_bounds = array<i64: 1, 8, 32>}]} {
    %c0 = arith.constant 0 : index
    %c0_0 = arith.constant 0 : index
    %c0_1 = arith.constant 0 : index
    %0 = vector.load %arg1[%c0, %c0_0, %c0_1] : memref<1x8x32xf32, #tpu.memory_space<vmem>>, vector<1x8x32xf32>
    %1 = vector.shape_cast %0 : vector<1x8x32xf32> to vector<8x32xf32>
    %c0_2 = arith.constant 0 : index
    %c0_3 = arith.constant 0 : index
    %c0_4 = arith.constant 0 : index
    %2 = vector.load %arg2[%c0_2, %c0_3, %c0_4] : memref<1x8x32xf32, #tpu.memory_space<vmem>>, vector<1x8x32xf32>
    %3 = vector.shape_cast %2 : vector<1x8x32xf32> to vector<8x32xf32>
    %4 = arith.addf %1, %3 : vector<8x32xf32>
    %5 = arith.truncf %4 : vector<8x32xf32> to vector<8x32xbf16>
    %c0_5 = arith.constant 0 : index
    %c0_6 = arith.constant 0 : index
    %6 = vector.load %arg3[%c0_5, %c0_6] : memref<32x64xbf16, #tpu.memory_space<vmem>>, vector<32x64xbf16>
    %cst = arith.constant dense<0.000000e+00> : vector<8x64xf32>
    %7 = tpu.matmul %5, %6, %cst {dimension_numbers = #tpu.dot_dimension_numbers<[1], [0], [0], [1], [0, 0, 1, 1], [], []>} : vector<8x32xbf16>, vector<32x64xbf16>, vector<8x64xf32> -> vector<8x64xf32>
    %c0_7 = arith.constant 0 : index
    %c0_8 = arith.constant 0 : index
    %8 = vector.load %arg4[%c0_7, %c0_8] : memref<1x64xf32, #tpu.memory_space<vmem>>, vector<1x64xf32>
    %9 = vector.broadcast %8 : vector<1x64xf32> to vector<8x64xf32>
    %10 = arith.addf %7, %9 : vector<8x64xf32>
    %11 = arith.truncf %1 : vector<8x32xf32> to vector<8x32xbf16>
    %c0_9 = arith.constant 0 : index
    %c0_10 = arith.constant 0 : index
    %12 = vector.load %arg5[%c0_9, %c0_10] : memref<32x32xbf16, #tpu.memory_space<vmem>>, vector<32x32xbf16>
    %cst_11 = arith.constant dense<0.000000e+00> : vector<8x32xf32>
    %13 = tpu.matmul %11, %12, %cst_11 {dimension_numbers = #tpu.dot_dimension_numbers<[1], [0], [0], [1], [0, 0, 1, 1], [], []>} : vector<8x32xbf16>, vector<32x32xbf16>, vector<8x32xf32> -> vector<8x32xf32>
    %c0_12 = arith.constant 0 : index
    %c0_13 = arith.constant 0 : index
    %14 = vector.load %arg6[%c0_12, %c0_13] : memref<1x32xf32, #tpu.memory_space<vmem>>, vector<1x32xf32>
    %15 = vector.broadcast %14 : vector<1x32xf32> to vector<8x32xf32>
    %16 = arith.addf %13, %15 : vector<8x32xf32>
    %17 = vector.extract_strided_slice %10 {offsets = [0, 0], sizes = [8, 32], strides = [1, 1]} : vector<8x64xf32> to vector<8x32xf32>
    %cst_14 = arith.constant 0.353553385 : f32
    %18 = vector.broadcast %cst_14 : f32 to vector<8x32xf32>
    %19 = arith.mulf %17, %18 : vector<8x32xf32>
    %20 = vector.extract_strided_slice %10 {offsets = [0, 32], sizes = [8, 32], strides = [1, 1]} : vector<8x64xf32> to vector<8x32xf32>
    %21 = vector.extract_strided_slice %19 {offsets = [0, 0], sizes = [8, 8], strides = [1, 1]} : vector<8x32xf32> to vector<8x8xf32>
    %22 = vector.extract_strided_slice %19 {offsets = [0, 8], sizes = [8, 8], strides = [1, 1]} : vector<8x32xf32> to vector<8x8xf32>
    %23 = vector.extract_strided_slice %19 {offsets = [0, 16], sizes = [8, 8], strides = [1, 1]} : vector<8x32xf32> to vector<8x8xf32>
    %24 = vector.extract_strided_slice %19 {offsets = [0, 24], sizes = [8, 8], strides = [1, 1]} : vector<8x32xf32> to vector<8x8xf32>
    %25 = vector.shape_cast %21 : vector<8x8xf32> to vector<1x8x8xf32>
    %26 = vector.shape_cast %22 : vector<8x8xf32> to vector<1x8x8xf32>
    %27 = vector.shape_cast %23 : vector<8x8xf32> to vector<1x8x8xf32>
    %28 = vector.shape_cast %24 : vector<8x8xf32> to vector<1x8x8xf32>
    %29 = tpu.concatenate %25, %26, %27, %28 in 0 : vector<1x8x8xf32>, vector<1x8x8xf32>, vector<1x8x8xf32>, vector<1x8x8xf32> -> vector<4x8x8xf32>
    %30 = vector.extract_strided_slice %20 {offsets = [0, 0], sizes = [8, 8], strides = [1, 1]} : vector<8x32xf32> to vector<8x8xf32>
    %31 = vector.extract_strided_slice %20 {offsets = [0, 8], sizes = [8, 8], strides = [1, 1]} : vector<8x32xf32> to vector<8x8xf32>
    %32 = vector.extract_strided_slice %20 {offsets = [0, 16], sizes = [8, 8], strides = [1, 1]} : vector<8x32xf32> to vector<8x8xf32>
    %33 = vector.extract_strided_slice %20 {offsets = [0, 24], sizes = [8, 8], strides = [1, 1]} : vector<8x32xf32> to vector<8x8xf32>
    %34 = vector.shape_cast %30 : vector<8x8xf32> to vector<1x8x8xf32>
    %35 = vector.shape_cast %31 : vector<8x8xf32> to vector<1x8x8xf32>
    %36 = vector.shape_cast %32 : vector<8x8xf32> to vector<1x8x8xf32>
    %37 = vector.shape_cast %33 : vector<8x8xf32> to vector<1x8x8xf32>
    %38 = tpu.concatenate %34, %35, %36, %37 in 0 : vector<1x8x8xf32>, vector<1x8x8xf32>, vector<1x8x8xf32>, vector<1x8x8xf32> -> vector<4x8x8xf32>
    %39 = vector.extract_strided_slice %16 {offsets = [0, 0], sizes = [8, 8], strides = [1, 1]} : vector<8x32xf32> to vector<8x8xf32>
    %40 = vector.extract_strided_slice %16 {offsets = [0, 8], sizes = [8, 8], strides = [1, 1]} : vector<8x32xf32> to vector<8x8xf32>
    %41 = vector.extract_strided_slice %16 {offsets = [0, 16], sizes = [8, 8], strides = [1, 1]} : vector<8x32xf32> to vector<8x8xf32>
    %42 = vector.extract_strided_slice %16 {offsets = [0, 24], sizes = [8, 8], strides = [1, 1]} : vector<8x32xf32> to vector<8x8xf32>
    %43 = vector.shape_cast %39 : vector<8x8xf32> to vector<1x8x8xf32>
    %44 = vector.shape_cast %40 : vector<8x8xf32> to vector<1x8x8xf32>
    %45 = vector.shape_cast %41 : vector<8x8xf32> to vector<1x8x8xf32>
    %46 = vector.shape_cast %42 : vector<8x8xf32> to vector<1x8x8xf32>
    %47 = tpu.concatenate %43, %44, %45, %46 in 0 : vector<1x8x8xf32>, vector<1x8x8xf32>, vector<1x8x8xf32>, vector<1x8x8xf32> -> vector<4x8x8xf32>
    %48 = arith.truncf %29 : vector<4x8x8xf32> to vector<4x8x8xbf16>
    %49 = arith.truncf %38 : vector<4x8x8xf32> to vector<4x8x8xbf16>
    "tpu.trace_start"() <{level = 10 : i32, message = "hqd,hkd->hqk"}> : () -> ()
    %cst_15 = arith.constant dense<0.000000e+00> : vector<4x8x8xf32>
    %50 = tpu.matmul %48, %49, %cst_15 {dimension_numbers = #tpu.dot_dimension_numbers<[2], [2], [1], [1], [0, 0, 0, 1, 1, 1], [0], [0]>} : vector<4x8x8xbf16>, vector<4x8x8xbf16>, vector<4x8x8xf32> -> vector<4x8x8xf32>
    "tpu.trace_stop"() : () -> ()
    %cst_16 = arith.constant dense<0xFF800000> : vector<4x8xf32>
    %51 = vector.multi_reduction <maximumf>, %50, %cst_16 [2] : vector<4x8x8xf32> to vector<4x8xf32>
    %52 = vector.shape_cast %51 : vector<4x8xf32> to vector<4x8x1xf32>
    %53 = vector.broadcast %52 : vector<4x8x1xf32> to vector<4x8x8xf32>
    %54 = arith.subf %50, %53 : vector<4x8x8xf32>
    %55 = math.exp %54 : vector<4x8x8xf32>
    %cst_17 = arith.constant dense<0.000000e+00> : vector<4x8xf32>
    %56 = vector.multi_reduction <add>, %55, %cst_17 [2] : vector<4x8x8xf32> to vector<4x8xf32>
    %57 = vector.shape_cast %56 : vector<4x8xf32> to vector<4x8x1xf32>
    %58 = tpu.reciprocal %57 {approx = true} : vector<4x8x1xf32> -> vector<4x8x1xf32>
    %59 = vector.broadcast %58 : vector<4x8x1xf32> to vector<4x8x8xf32>
    %60 = arith.mulf %55, %59 : vector<4x8x8xf32>
    %61 = arith.truncf %60 : vector<4x8x8xf32> to vector<4x8x8xbf16>
    %62 = arith.truncf %47 : vector<4x8x8xf32> to vector<4x8x8xbf16>
    "tpu.trace_start"() <{level = 10 : i32, message = "hqk,hkd->hqd"}> : () -> ()
    %cst_18 = arith.constant dense<0.000000e+00> : vector<4x8x8xf32>
    %63 = tpu.matmul %61, %62, %cst_18 {dimension_numbers = #tpu.dot_dimension_numbers<[2], [1], [1], [2], [0, 0, 0, 1, 1, 2], [0], [0]>} : vector<4x8x8xbf16>, vector<4x8x8xbf16>, vector<4x8x8xf32> -> vector<4x8x8xf32>
    "tpu.trace_stop"() : () -> ()
    %64 = vector.extract_strided_slice %63 {offsets = [0, 0, 0], sizes = [1, 8, 8], strides = [1, 1, 1]} : vector<4x8x8xf32> to vector<1x8x8xf32>
    %65 = vector.shape_cast %64 : vector<1x8x8xf32> to vector<8x8xf32>
    %66 = vector.extract_strided_slice %63 {offsets = [1, 0, 0], sizes = [1, 8, 8], strides = [1, 1, 1]} : vector<4x8x8xf32> to vector<1x8x8xf32>
    %67 = vector.shape_cast %66 : vector<1x8x8xf32> to vector<8x8xf32>
    %68 = vector.extract_strided_slice %63 {offsets = [2, 0, 0], sizes = [1, 8, 8], strides = [1, 1, 1]} : vector<4x8x8xf32> to vector<1x8x8xf32>
    %69 = vector.shape_cast %68 : vector<1x8x8xf32> to vector<8x8xf32>
    %70 = vector.extract_strided_slice %63 {offsets = [3, 0, 0], sizes = [1, 8, 8], strides = [1, 1, 1]} : vector<4x8x8xf32> to vector<1x8x8xf32>
    %71 = vector.shape_cast %70 : vector<1x8x8xf32> to vector<8x8xf32>
    %72 = tpu.concatenate %65, %67, %69, %71 in 1 : vector<8x8xf32>, vector<8x8xf32>, vector<8x8xf32>, vector<8x8xf32> -> vector<8x32xf32>
    %73 = arith.truncf %72 : vector<8x32xf32> to vector<8x32xbf16>
    %c0_19 = arith.constant 0 : index
    %c0_20 = arith.constant 0 : index
    %74 = vector.load %arg7[%c0_19, %c0_20] : memref<32x32xbf16, #tpu.memory_space<vmem>>, vector<32x32xbf16>
    %cst_21 = arith.constant dense<0.000000e+00> : vector<8x32xf32>
    %75 = tpu.matmul %73, %74, %cst_21 {dimension_numbers = #tpu.dot_dimension_numbers<[1], [0], [0], [1], [0, 0, 1, 1], [], []>} : vector<8x32xbf16>, vector<32x32xbf16>, vector<8x32xf32> -> vector<8x32xf32>
    %c0_22 = arith.constant 0 : index
    %c0_23 = arith.constant 0 : index
    %76 = vector.load %arg8[%c0_22, %c0_23] : memref<1x32xf32, #tpu.memory_space<vmem>>, vector<1x32xf32>
    %77 = vector.broadcast %76 : vector<1x32xf32> to vector<8x32xf32>
    %78 = arith.addf %75, %77 : vector<8x32xf32>
    %79 = arith.addf %1, %78 : vector<8x32xf32>
    %c0_24 = arith.constant 0 : index
    %c0_25 = arith.constant 0 : index
    %80 = vector.load %arg9[%c0_24, %c0_25] : memref<1x32xf32, #tpu.memory_space<vmem>>, vector<1x32xf32>
    %c0_26 = arith.constant 0 : index
    %c0_27 = arith.constant 0 : index
    %81 = vector.load %arg10[%c0_26, %c0_27] : memref<1x32xf32, #tpu.memory_space<vmem>>, vector<1x32xf32>
    %cst_28 = arith.constant dense<0.000000e+00> : vector<8xf32>
    %82 = vector.multi_reduction <add>, %79, %cst_28 [1] : vector<8x32xf32> to vector<8xf32>
    %83 = vector.shape_cast %82 : vector<8xf32> to vector<8x1xf32>
    %cst_29 = arith.constant 3.200000e+01 : f32
    %84 = vector.broadcast %cst_29 : f32 to vector<8x1xf32>
    %85 = arith.divf %83, %84 : vector<8x1xf32>
    %86 = vector.broadcast %85 : vector<8x1xf32> to vector<8x32xf32>
    %87 = arith.subf %79, %86 : vector<8x32xf32>
    %88 = arith.mulf %87, %87 : vector<8x32xf32>
    %cst_30 = arith.constant dense<0.000000e+00> : vector<8xf32>
    %89 = vector.multi_reduction <add>, %88, %cst_30 [1] : vector<8x32xf32> to vector<8xf32>
    %90 = vector.shape_cast %89 : vector<8xf32> to vector<8x1xf32>
    %cst_31 = arith.constant 3.200000e+01 : f32
    %91 = vector.broadcast %cst_31 : f32 to vector<8x1xf32>
    %92 = arith.divf %90, %91 : vector<8x1xf32>
    %cst_32 = arith.constant 9.99999974E-6 : f32
    %93 = vector.broadcast %cst_32 : f32 to vector<8x1xf32>
    %94 = arith.addf %92, %93 : vector<8x1xf32>
    %95 = math.rsqrt %94 : vector<8x1xf32>
    %96 = vector.broadcast %95 : vector<8x1xf32> to vector<8x32xf32>
    %97 = arith.mulf %87, %96 : vector<8x32xf32>
    %98 = vector.broadcast %80 : vector<1x32xf32> to vector<8x32xf32>
    %99 = arith.mulf %97, %98 : vector<8x32xf32>
    %100 = vector.broadcast %81 : vector<1x32xf32> to vector<8x32xf32>
    %101 = arith.addf %99, %100 : vector<8x32xf32>
    %c0_33 = arith.constant 0 : index
    %c0_34 = arith.constant 0 : index
    %c0_35 = arith.constant 0 : index
    %102 = vector.load %arg11[%c0_33, %c0_34, %c0_35] : memref<1x8x32xf32, #tpu.memory_space<vmem>>, vector<1x8x32xf32>
    %103 = vector.shape_cast %102 : vector<1x8x32xf32> to vector<8x32xf32>
    %104 = vector.shape_cast %101 : vector<8x32xf32> to vector<1x8x32xf32>
    tpu.vector_store %arg11[%c0_33, %c0_34, %c0_35], %104 {strides = array<i32>} : memref<1x8x32xf32, #tpu.memory_space<vmem>>, vector<1x8x32xf32>,
    return
  }
  func.func @transform_0(%arg0: i32) -> (i32, i32, i32) {
    %c0_i32 = arith.constant 0 : i32
    %c0_i32_0 = arith.constant 0 : i32
    %c0_i32_1 = arith.constant 0 : i32
    return %arg0, %c0_i32, %c0_i32_0 : i32, i32, i32
  }
  func.func @transform_1(%arg0: i32) -> (i32, i32, i32) {
    %c0_i32 = arith.constant 0 : i32
    %c0_i32_0 = arith.constant 0 : i32
    %c0_i32_1 = arith.constant 0 : i32
    return %arg0, %c0_i32, %c0_i32_0 : i32, i32, i32
  }
  func.func @transform_2(%arg0: i32) -> (i32, i32) {
    %c0_i32 = arith.constant 0 : i32
    %c0_i32_0 = arith.constant 0 : i32
    %c0_i32_1 = arith.constant 0 : i32
    return %c0_i32, %c0_i32_0 : i32, i32
  }
  func.func @transform_3(%arg0: i32) -> (i32, i32) {
    %c0_i32 = arith.constant 0 : i32
    %c0_i32_0 = arith.constant 0 : i32
    %c0_i32_1 = arith.constant 0 : i32
    return %c0_i32, %c0_i32_0 : i32, i32
  }
  func.func @transform_4(%arg0: i32) -> (i32, i32) {
    %c0_i32 = arith.constant 0 : i32
    %c0_i32_0 = arith.constant 0 : i32
    %c0_i32_1 = arith.constant 0 : i32
    return %c0_i32, %c0_i32_0 : i32, i32
  }
  func.func @transform_5(%arg0: i32) -> (i32, i32) {
    %c0_i32 = arith.constant 0 : i32
    %c0_i32_0 = arith.constant 0 : i32
    %c0_i32_1 = arith.constant 0 : i32
    return %c0_i32, %c0_i32_0 : i32, i32
  }
  func.func @transform_6(%arg0: i32) -> (i32, i32) {
    %c0_i32 = arith.constant 0 : i32
    %c0_i32_0 = arith.constant 0 : i32
    %c0_i32_1 = arith.constant 0 : i32
    return %c0_i32, %c0_i32_0 : i32, i32
  }
  func.func @transform_7(%arg0: i32) -> (i32, i32) {
    %c0_i32 = arith.constant 0 : i32
    %c0_i32_0 = arith.constant 0 : i32
    %c0_i32_1 = arith.constant 0 : i32
    return %c0_i32, %c0_i32_0 : i32, i32
  }
  func.func @transform_8(%arg0: i32) -> (i32, i32) {
    %c0_i32 = arith.constant 0 : i32
    %c0_i32_0 = arith.constant 0 : i32
    %c0_i32_1 = arith.constant 0 : i32
    return %c0_i32, %c0_i32_0 : i32, i32
  }
  func.func @transform_9(%arg0: i32) -> (i32, i32) {
    %c0_i32 = arith.constant 0 : i32
    %c0_i32_0 = arith.constant 0 : i32
    %c0_i32_1 = arith.constant 0 : i32
    return %c0_i32, %c0_i32_0 : i32, i32
  }
  func.func @transform_10(%arg0: i32) -> (i32, i32, i32) {
    %c0_i32 = arith.constant 0 : i32
    %c0_i32_0 = arith.constant 0 : i32
    %c0_i32_1 = arith.constant 0 : i32
    return %arg0, %c0_i32, %c0_i32_0 : i32, i32, i32
  }
}

</mosaic_0001>

<llo_original>
// kernel: tpu_custom_call.1
$region0: #{tpu_custom_call.1}
  #allocation0 [shape = 'u32[]', space=smem, size = 0x4, offset = 0x4, fixed_abs, tag = 'smem constant byte address 0x4 - core index']
  #allocation1 [shape = 'u32[72,128]{1,0:T(1,128)}', space=vmem, size = 0x9000, scoped, tag = 'internal scratch']
  %s0 = inlined_call_operand.hbm [shape: f32[2,8,32], index: 0, kind: input, shape index: {}]
  %s1 = inlined_call_operand.hbm [shape: f32[2,8,32], index: 1, kind: input, shape index: {}]
  %s2 = inlined_call_operand.hbm [shape: bf16[32,64], index: 2, kind: input, shape index: {}]
  %s3 = inlined_call_operand.vmem [shape: f32[1,64], index: 3, kind: input, shape index: {}]
  %s4 = inlined_call_operand.hbm [shape: bf16[32,32], index: 4, kind: input, shape index: {}]
  %s5 = inlined_call_operand.vmem [shape: f32[1,32], index: 5, kind: input, shape index: {}]
  %s6 = inlined_call_operand.hbm [shape: bf16[32,32], index: 6, kind: input, shape index: {}]
  %s7 = inlined_call_operand.vmem [shape: f32[1,32], index: 7, kind: input, shape index: {}]
  %s8 = inlined_call_operand.vmem [shape: f32[1,32], index: 8, kind: input, shape index: {}]
  %s9 = inlined_call_operand.vmem [shape: f32[1,32], index: 9, kind: input, shape index: {}]
  %s10 = inlined_call_operand.hbm [shape: f32[2,8,32], index: 10, kind: output, shape index: {}]
  %s11 = sld [smem:[#allocation0]]
  $region93: #{tpu_custom_call.1} parent=0
    _
  %s13 = ssub.s32 1, %s11
  %s14 = scalar_select 0, %s13, %s11
  $region1: #{tpu_custom_call.1} parent=0
    #allocation2 [shape = 'u8[8192]{0}', space=vmem, size = 0x2000, scoped, tag = 'input window, operand 0']
    #allocation3 [shape = 's32[2]{0}', space=sflag, size = 0x8, scoped, tag = 'scoped memory for tpu_custom_call.1']
    #allocation4 [shape = 's32[2]{0}', space=sflag, size = 0x8, scoped, tag = 'scoped memory for tpu_custom_call.1']
    #allocation5 [shape = 'u8[8192]{0}', space=vmem, size = 0x2000, scoped, tag = 'input window, operand 1']
    #allocation6 [shape = 's32[2]{0}', space=sflag, size = 0x8, scoped, tag = 'scoped memory for tpu_custom_call.1']
    #allocation7 [shape = 'u8[8192]{0}', space=vmem, size = 0x2000, scoped, tag = 'input window, operand 2, single buffered']
    #allocation8 [shape = 'u8[8192]{0}', space=vmem, size = 0x2000, scoped, tag = 'input window, operand 4, single buffered']
    #allocation9 [shape = 's32[1]{0}', space=sflag, size = 0x4, scoped, tag = 'scoped memory for tpu_custom_call.1']
    #allocation10 [shape = 'u8[8192]{0}', space=vmem, size = 0x2000, scoped, tag = 'input window, operand 6, single buffered']
    #allocation11 [shape = 'u8[8192]{0}', space=vmem, size = 0x2000, scoped, tag = 'output window, operand 0']
    %15 = vsyncpa [#allocation3], 0
    %s16 = scalar_lea.sflag [#allocation3], 1
    %17 = vsyncpa %s16, 0
    %18 = vsyncpa [#allocation6], 0
    %s19 = scalar_lea.sflag [#allocation6], 1
    %20 = vsyncpa %s19, 0
    %21 = vsyncpa [#allocation9], 0
    %22 = vsyncpa [#allocation4], 0
    %s23 = scalar_lea.sflag [#allocation4], 1
    %24 = vsyncpa %s23, 0
    loop: start=0, step=1, limit=4
    $region2: #{tpu_custom_call.1} parent=1 // loop_pre_header
      _
    $region3: #{tpu_custom_call.1} parent=1 // loop_header
      %s26 = sphi 0, %s30
      %p27 = scmp.ge.s32.totalorder %s26, 4
      %s36 = sphi 0, %s38
      %s39 = sphi 0, %s36
      %s40 = sphi 0, %s39
      %s56 = sphi 0, %s40
      %s62 = sphi 0, %s64
      %s65 = sphi 0, %s62
      %s66 = sphi 0, %s65
      %s82 = sphi 0, %s66
      %s86 = sphi 0, %s86
      %s88 = sphi 0, %s86
      %s89 = sphi 0, %s88
      %s103 = sphi 0, %s89
      %s107 = sphi 0, %s107
      %s109 = sphi 0, %s107
      %s110 = sphi 0, %s109
      %s124 = sphi 0, %s110
      %s128 = sphi 0, %s128
      %s130 = sphi 0, %s128
      %s131 = sphi 0, %s130
      %s145 = sphi 0, %s131
      %s149 = sphi 0, %s149
      %s151 = sphi 0, %s149
      %s152 = sphi 0, %s151
      %s166 = sphi 0, %s152
      %s170 = sphi 0, %s170
      %s172 = sphi 0, %s170
      %s173 = sphi 0, %s172
      %s187 = sphi 0, %s173
      %s191 = sphi 0, %s191
      %s193 = sphi 0, %s191
      %s194 = sphi 0, %s193
      %s208 = sphi 0, %s194
      %s212 = sphi 0, %s212
      %s214 = sphi 0, %s212
      %s215 = sphi 0, %s214
      %s229 = sphi 0, %s215
      %s233 = sphi 0, %s233
      %s235 = sphi 0, %s233
      %s236 = sphi 0, %s235
      %s250 = sphi 0, %s236
      %s256 = sphi 0, %s258
      %s259 = sphi 0, %s256
      %s260 = sphi 0, %s259
      %s276 = sphi 0, %s260
    $region4: #{tpu_custom_call.1} parent=1 // loop_header_branch
      %29 = sbr.rel (%p27) target = $region8
    $region5: #{tpu_custom_call.1} parent=1 // loop_body
      %s31 = ssub.s32 %s26, 1
      %s32 = ssub.s32 %s26, 2
      %s33 = sadd.s32 %s26, 1
      %s34 = ssub.s32 %s26, %s33
      %p35 = scmp.eq.s32.totalorder %s34, 0
      %s37 = sadd.s32 %s36, 1
      %s38 = scalar_select %p35, %s36, %s37
      %p41 = pneg %p35
      %p42 = scmp.eq.s32.totalorder %s26, 1
      %p43 = por %p41, %p42
      %p44 = scmp.ne.s32.totalorder %s36, %s39
      %p45 = scmp.eq.s32.totalorder %s26, 0
      %p46 = por %p44, %p45
      %p47 = scmp.ne.s32.totalorder %s36, %s39
      %p48 = scmp.eq.s32.totalorder %s31, 1
      %p49 = por %p47, %p48
      %p50 = scmp.ne.s32.totalorder %s39, %s40
      %p51 = scmp.eq.s32.totalorder %s31, 0
      %p52 = por %p50, %p51
      %p53 = scmp.ne.s32.totalorder %s39, %s40
      %p54 = scmp.eq.s32.totalorder %s32, 1
      %p55 = por %p53, %p54
      %p57 = scmp.ne.s32.totalorder %s40, %s56
      %p58 = scmp.eq.s32.totalorder %s32, 0
      %p59 = por %p57, %p58
      %s60 = ssub.s32 %s26, %s33
      %p61 = scmp.eq.s32.totalorder %s60, 0
      %s63 = sadd.s32 %s62, 1
      %s64 = scalar_select %p61, %s62, %s63
      %p67 = pneg %p61
      %p68 = scmp.eq.s32.totalorder %s26, 1
      %p69 = por %p67, %p68
      %p70 = scmp.ne.s32.totalorder %s62, %s65
      %p71 = scmp.eq.s32.totalorder %s26, 0
      %p72 = por %p70, %p71
      %p73 = scmp.ne.s32.totalorder %s62, %s65
      %p74 = scmp.eq.s32.totalorder %s31, 1
      %p75 = por %p73, %p74
      %p76 = scmp.ne.s32.totalorder %s65, %s66
      %p77 = scmp.eq.s32.totalorder %s31, 0
      %p78 = por %p76, %p77
      %p79 = scmp.ne.s32.totalorder %s65, %s66
      %p80 = scmp.eq.s32.totalorder %s32, 1
      %p81 = por %p79, %p80
      %p83 = scmp.ne.s32.totalorder %s66, %s82
      %p84 = scmp.eq.s32.totalorder %s32, 0
      %p85 = por %p83, %p84
      %s87 = sadd.s32 %s86, 1
      %p90 = scmp.eq.s32.totalorder %s26, 1
      %p91 = scmp.ne.s32.totalorder %s86, %s88
      %p92 = scmp.eq.s32.totalorder %s26, 0
      %p93 = por %p91, %p92
      %p94 = scmp.ne.s32.totalorder %s86, %s88
      %p95 = scmp.eq.s32.totalorder %s31, 1
      %p96 = por %p94, %p95
      %p97 = scmp.ne.s32.totalorder %s88, %s89
      %p98 = scmp.eq.s32.totalorder %s31, 0
      %p99 = por %p97, %p98
      %p100 = scmp.ne.s32.totalorder %s88, %s89
      %p101 = scmp.eq.s32.totalorder %s32, 1
      %p102 = por %p100, %p101
      %p104 = scmp.ne.s32.totalorder %s89, %s103
      %p105 = scmp.eq.s32.totalorder %s32, 0
      %p106 = por %p104, %p105
      %s108 = sadd.s32 %s107, 1
      %p111 = scmp.eq.s32.totalorder %s26, 1
      %p112 = scmp.ne.s32.totalorder %s107, %s109
      %p113 = scmp.eq.s32.totalorder %s26, 0
      %p114 = por %p112, %p113
      %p115 = scmp.ne.s32.totalorder %s107, %s109
      %p116 = scmp.eq.s32.totalorder %s31, 1
      %p117 = por %p115, %p116
      %p118 = scmp.ne.s32.totalorder %s109, %s110
      %p119 = scmp.eq.s32.totalorder %s31, 0
      %p120 = por %p118, %p119
      %p121 = scmp.ne.s32.totalorder %s109, %s110
      %p122 = scmp.eq.s32.totalorder %s32, 1
      %p123 = por %p121, %p122
      %p125 = scmp.ne.s32.totalorder %s110, %s124
      %p126 = scmp.eq.s32.totalorder %s32, 0
      %p127 = por %p125, %p126
      %s129 = sadd.s32 %s128, 1
      %p132 = scmp.eq.s32.totalorder %s26, 1
      %p133 = scmp.ne.s32.totalorder %s128, %s130
      %p134 = scmp.eq.s32.totalorder %s26, 0
      %p135 = por %p133, %p134
      %p136 = scmp.ne.s32.totalorder %s128, %s130
      %p137 = scmp.eq.s32.totalorder %s31, 1
      %p138 = por %p136, %p137
      %p139 = scmp.ne.s32.totalorder %s130, %s131
      %p140 = scmp.eq.s32.totalorder %s31, 0
      %p141 = por %p139, %p140
      %p142 = scmp.ne.s32.totalorder %s130, %s131
      %p143 = scmp.eq.s32.totalorder %s32, 1
      %p144 = por %p142, %p143
      %p146 = scmp.ne.s32.totalorder %s131, %s145
      %p147 = scmp.eq.s32.totalorder %s32, 0
      %p148 = por %p146, %p147
      %s150 = sadd.s32 %s149, 1
      %p153 = scmp.eq.s32.totalorder %s26, 1
      %p154 = scmp.ne.s32.totalorder %s149, %s151
      %p155 = scmp.eq.s32.totalorder %s26, 0
      %p156 = por %p154, %p155
      %p157 = scmp.ne.s32.totalorder %s149, %s151
      %p158 = scmp.eq.s32.totalorder %s31, 1
      %p159 = por %p157, %p158
      %p160 = scmp.ne.s32.totalorder %s151, %s152
      %p161 = scmp.eq.s32.totalorder %s31, 0
      %p162 = por %p160, %p161
      %p163 = scmp.ne.s32.totalorder %s151, %s152
      %p164 = scmp.eq.s32.totalorder %s32, 1
      %p165 = por %p163, %p164
      %p167 = scmp.ne.s32.totalorder %s152, %s166
      %p168 = scmp.eq.s32.totalorder %s32, 0
      %p169 = por %p167, %p168
      %s171 = sadd.s32 %s170, 1
      %p174 = scmp.eq.s32.totalorder %s26, 1
      %p175 = scmp.ne.s32.totalorder %s170, %s172
      %p176 = scmp.eq.s32.totalorder %s26, 0
      %p177 = por %p175, %p176
      %p178 = scmp.ne.s32.totalorder %s170, %s172
      %p179 = scmp.eq.s32.totalorder %s31, 1
      %p180 = por %p178, %p179
      %p181 = scmp.ne.s32.totalorder %s172, %s173
      %p182 = scmp.eq.s32.totalorder %s31, 0
      %p183 = por %p181, %p182
      %p184 = scmp.ne.s32.totalorder %s172, %s173
      %p185 = scmp.eq.s32.totalorder %s32, 1
      %p186 = por %p184, %p185
      %p188 = scmp.ne.s32.totalorder %s173, %s187
      %p189 = scmp.eq.s32.totalorder %s32, 0
      %p190 = por %p188, %p189
      %s192 = sadd.s32 %s191, 1
      %p195 = scmp.eq.s32.totalorder %s26, 1
      %p196 = scmp.ne.s32.totalorder %s191, %s193
      %p197 = scmp.eq.s32.totalorder %s26, 0
      %p198 = por %p196, %p197
      %p199 = scmp.ne.s32.totalorder %s191, %s193
      %p200 = scmp.eq.s32.totalorder %s31, 1
      %p201 = por %p199, %p200
      %p202 = scmp.ne.s32.totalorder %s193, %s194
      %p203 = scmp.eq.s32.totalorder %s31, 0
      %p204 = por %p202, %p203
      %p205 = scmp.ne.s32.totalorder %s193, %s194
      %p206 = scmp.eq.s32.totalorder %s32, 1
      %p207 = por %p205, %p206
      %p209 = scmp.ne.s32.totalorder %s194, %s208
      %p210 = scmp.eq.s32.totalorder %s32, 0
      %p211 = por %p209, %p210
      %s213 = sadd.s32 %s212, 1
      %p216 = scmp.eq.s32.totalorder %s26, 1
      %p217 = scmp.ne.s32.totalorder %s212, %s214
      %p218 = scmp.eq.s32.totalorder %s26, 0
      %p219 = por %p217, %p218
      %p220 = scmp.ne.s32.totalorder %s212, %s214
      %p221 = scmp.eq.s32.totalorder %s31, 1
      %p222 = por %p220, %p221
      %p223 = scmp.ne.s32.totalorder %s214, %s215
      %p224 = scmp.eq.s32.totalorder %s31, 0
      %p225 = por %p223, %p224
      %p226 = scmp.ne.s32.totalorder %s214, %s215
      %p227 = scmp.eq.s32.totalorder %s32, 1
      %p228 = por %p226, %p227
      %p230 = scmp.ne.s32.totalorder %s215, %s229
      %p231 = scmp.eq.s32.totalorder %s32, 0
      %p232 = por %p230, %p231
      %s234 = sadd.s32 %s233, 1
      %p237 = scmp.eq.s32.totalorder %s26, 1
      %p238 = scmp.ne.s32.totalorder %s233, %s235
      %p239 = scmp.eq.s32.totalorder %s26, 0
      %p240 = por %p238, %p239
      %p241 = scmp.ne.s32.totalorder %s233, %s235
      %p242 = scmp.eq.s32.totalorder %s31, 1
      %p243 = por %p241, %p242
      %p244 = scmp.ne.s32.totalorder %s235, %s236
      %p245 = scmp.eq.s32.totalorder %s31, 0
      %p246 = por %p244, %p245
      %p247 = scmp.ne.s32.totalorder %s235, %s236
      %p248 = scmp.eq.s32.totalorder %s32, 1
      %p249 = por %p247, %p248
      %p251 = scmp.ne.s32.totalorder %s236, %s250
      %p252 = scmp.eq.s32.totalorder %s32, 0
      %p253 = por %p251, %p252
      %s254 = ssub.s32 %s26, %s33
      %p255 = scmp.eq.s32.totalorder %s254, 0
      %s257 = sadd.s32 %s256, 1
      %s258 = scalar_select %p255, %s256, %s257
      %p261 = pneg %p255
      %p262 = scmp.eq.s32.totalorder %s26, 1
      %p263 = por %p261, %p262
      %p264 = scmp.ne.s32.totalorder %s256, %s259
      %p265 = scmp.eq.s32.totalorder %s26, 0
      %p266 = por %p264, %p265
      %p267 = scmp.ne.s32.totalorder %s256, %s259
      %p268 = scmp.eq.s32.totalorder %s31, 1
      %p269 = por %p267, %p268
      %p270 = scmp.ne.s32.totalorder %s259, %s260
      %p271 = scmp.eq.s32.totalorder %s31, 0
      %p272 = por %p270, %p271
      %p273 = scmp.ne.s32.totalorder %s259, %s260
      %p274 = scmp.eq.s32.totalorder %s32, 1
      %p275 = por %p273, %p274
      %p277 = scmp.ne.s32.totalorder %s260, %s276
      %p278 = scmp.eq.s32.totalorder %s32, 0
      %p279 = por %p277, %p278
      %p280 = scmp.le.s32.totalorder 1, %s26
      %p281 = scmp.lt.s32.totalorder %s26, 3
      %p282 = pnand %p280, %p281
      %p283 = pneg %p282
      // Predicated region
      $region9: #{tpu_custom_call.1} parent=5 // pred_check
        _
      $region10: #{tpu_custom_call.1} parent=5 // pred_check_branch
        %285 = sbr.rel (%p282) target = $region12
      $region11: #{tpu_custom_call.1} parent=5 // pred_region
        %s286 = ssub.s32 %s26, 1
        // Predicated region
        $region13: #{tpu_custom_call.1} parent=11 // pred_check
          %p287 = pneg %p99
        $region14: #{tpu_custom_call.1} parent=11 // pred_check_branch
          %289 = sbr.rel (%p287) target = $region16
        $region15: #{tpu_custom_call.1} parent=11 // pred_region
          %291 = vsyncadd [#allocation6], 0
          %s292 = sshll.u32 %s2, 4
          %s293 = int_to_ptr.hbm [resolvable:$true] %s292
          %s294 = sshll.u32 [#allocation7], 4
          %s295 = int_to_ptr.vmem [resolvable:$true] %s294
          %300 = dma.hbm_to_vmem [thread:$0]  %s293, 256, %s295, [#allocation6], 64, 64, 4
        $region16: #{tpu_custom_call.1} parent=11 // pred_fallthru
          _
        // Predicated region
        $region17: #{tpu_custom_call.1} parent=11 // pred_check
          %p301 = pneg %p120
        $region18: #{tpu_custom_call.1} parent=11 // pred_check_branch
          %303 = sbr.rel (%p301) target = $region20
        $region19: #{tpu_custom_call.1} parent=11 // pred_region
          _
        $region20: #{tpu_custom_call.1} parent=11 // pred_fallthru
          _
        // Predicated region
        $region21: #{tpu_custom_call.1} parent=11 // pred_check
          %p304 = pneg %p141
        $region22: #{tpu_custom_call.1} parent=11 // pred_check_branch
          %306 = sbr.rel (%p304) target = $region24
        $region23: #{tpu_custom_call.1} parent=11 // pred_region
          %308 = vsyncadd [#allocation9], 0
          %s309 = sshll.u32 %s4, 4
          %s310 = int_to_ptr.hbm [resolvable:$true] %s309
          %s311 = sshll.u32 [#allocation8], 4
          %s312 = int_to_ptr.vmem [resolvable:$true] %s311
          %317 = dma.hbm_to_vmem [thread:$0]  %s310, 256, %s312, [#allocation9], 64, 64, 4
        $region24: #{tpu_custom_call.1} parent=11 // pred_fallthru
          _
        // Predicated region
        $region25: #{tpu_custom_call.1} parent=11 // pred_check
          %p318 = pneg %p162
        $region26: #{tpu_custom_call.1} parent=11 // pred_check_branch
          %320 = sbr.rel (%p318) target = $region28
        $region27: #{tpu_custom_call.1} parent=11 // pred_region
          _
        $region28: #{tpu_custom_call.1} parent=11 // pred_fallthru
          _
        // Predicated region
        $region29: #{tpu_custom_call.1} parent=11 // pred_check
          %p321 = pneg %p183
        $region30: #{tpu_custom_call.1} parent=11 // pred_check_branch
          %323 = sbr.rel (%p321) target = $region32
        $region31: #{tpu_custom_call.1} parent=11 // pred_region
          %325 = vsyncadd [#allocation9], 0
          %s326 = sshll.u32 %s6, 4
          %s327 = int_to_ptr.hbm [resolvable:$true] %s326
          %s328 = sshll.u32 [#allocation10], 4
          %s329 = int_to_ptr.vmem [resolvable:$true] %s328
          %334 = dma.hbm_to_vmem [thread:$0]  %s327, 256, %s329, [#allocation9], 64, 64, 4
        $region32: #{tpu_custom_call.1} parent=11 // pred_fallthru
          _
        // Predicated region
        $region33: #{tpu_custom_call.1} parent=11 // pred_check
          %p335 = pneg %p204
        $region34: #{tpu_custom_call.1} parent=11 // pred_check_branch
          %337 = sbr.rel (%p335) target = $region36
        $region35: #{tpu_custom_call.1} parent=11 // pred_region
          _
        $region36: #{tpu_custom_call.1} parent=11 // pred_fallthru
          _
        // Predicated region
        $region37: #{tpu_custom_call.1} parent=11 // pred_check
          %p338 = pneg %p225
        $region38: #{tpu_custom_call.1} parent=11 // pred_check_branch
          %340 = sbr.rel (%p338) target = $region40
        $region39: #{tpu_custom_call.1} parent=11 // pred_region
          _
        $region40: #{tpu_custom_call.1} parent=11 // pred_fallthru
          _
        // Predicated region
        $region41: #{tpu_custom_call.1} parent=11 // pred_check
          %p341 = pneg %p246
        $region42: #{tpu_custom_call.1} parent=11 // pred_check_branch
          %343 = sbr.rel (%p341) target = $region44
        $region43: #{tpu_custom_call.1} parent=11 // pred_region
          _
        $region44: #{tpu_custom_call.1} parent=11 // pred_fallthru
          _
      $region12: #{tpu_custom_call.1} parent=5 // pred_fallthru
        _
      %p344 = scmp.lt.s32.totalorder %s26, 2
      // Predicated region
      $region45: #{tpu_custom_call.1} parent=5 // pred_check
        %p345 = pneg %p344
      $region46: #{tpu_custom_call.1} parent=5 // pred_check_branch
        %347 = sbr.rel (%p345) target = $region48
      $region47: #{tpu_custom_call.1} parent=5 // pred_region
        // Predicated region
        $region49: #{tpu_custom_call.1} parent=47 // pred_check
          %p348 = pneg %p46
        $region50: #{tpu_custom_call.1} parent=47 // pred_check_branch
          %350 = sbr.rel (%p348) target = $region52
        $region51: #{tpu_custom_call.1} parent=47 // pred_region
          %s351 = sand.u32 %s36, 1
          %s352 = scalar_lea.sflag [#allocation3], %s351
          %s353 = sand.u32 %s36, 1
          %s354 = smul.addr %s353, 8
          %s355 = scalar_lea.vmem [#allocation2], %s354
          %357 = vsyncadd %s352, 0
          %s358 = smul.addr %s26, 8
          %s359 = scalar_lea.hbm %s0, %s358
          %s361 = sshll.u32 %s359, 4
          %s362 = int_to_ptr.hbm [resolvable:$true] %s361
          %s363 = sshll.u32 %s355, 4
          %s364 = int_to_ptr.vmem [resolvable:$true] %s363
          %366 = dma.hbm_to_vmem [thread:$0]  %s362, 128, %s364, %s352
        $region52: #{tpu_custom_call.1} parent=47 // pred_fallthru
          _
        // Predicated region
        $region53: #{tpu_custom_call.1} parent=47 // pred_check
          %p367 = pneg %p72
        $region54: #{tpu_custom_call.1} parent=47 // pred_check_branch
          %369 = sbr.rel (%p367) target = $region56
        $region55: #{tpu_custom_call.1} parent=47 // pred_region
          %s370 = sand.u32 %s26, 1
          %s371 = scalar_lea.sflag [#allocation6], %s370
          %s372 = sand.u32 %s62, 1
          %s373 = smul.addr %s372, 8
          %s374 = scalar_lea.vmem [#allocation5], %s373
          %376 = vsyncadd %s371, 0
          %s377 = smul.addr %s26, 8
          %s378 = scalar_lea.hbm %s1, %s377
          %s380 = sshll.u32 %s378, 4
          %s381 = int_to_ptr.hbm [resolvable:$true] %s380
          %s382 = sshll.u32 %s374, 4
          %s383 = int_to_ptr.vmem [resolvable:$true] %s382
          %385 = dma.hbm_to_vmem [thread:$0]  %s381, 128, %s383, %s371
        $region56: #{tpu_custom_call.1} parent=47 // pred_fallthru
          _
      $region48: #{tpu_custom_call.1} parent=5 // pred_fallthru
        _
      %p386 = scmp.le.s32.totalorder 1, %s26
      %p387 = scmp.lt.s32.totalorder %s26, 3
      %p388 = pnand %p386, %p387
      %p389 = pneg %p388
      // Predicated region
      $region57: #{tpu_custom_call.1} parent=5 // pred_check
        _
      $region58: #{tpu_custom_call.1} parent=5 // pred_check_branch
        %391 = sbr.rel (%p388) target = $region60
      $region59: #{tpu_custom_call.1} parent=5 // pred_region
        %s392 = ssub.s32 %s26, 1
        %s393 = sand.u32 %s39, 1
        %s394 = scalar_lea.sflag [#allocation3], %s393
        %s395 = sand.u32 %s39, 1
        %s396 = smul.addr %s395, 8
        %s397 = scalar_lea.vmem [#allocation2], %s396
        // Predicated region
        $region61: #{tpu_custom_call.1} parent=59 // pred_check
          %p398 = pneg %p52
        $region62: #{tpu_custom_call.1} parent=59 // pred_check_branch
          %400 = sbr.rel (%p398) target = $region64
        $region63: #{tpu_custom_call.1} parent=59 // pred_region
          %402 = dma.done %s394, 128
        $region64: #{tpu_custom_call.1} parent=59 // pred_fallthru
          _
        %s403 = sand.u32 %s31, 1
        %s404 = scalar_lea.sflag [#allocation6], %s403
        %s405 = sand.u32 %s65, 1
        %s406 = smul.addr %s405, 8
        %s407 = scalar_lea.vmem [#allocation5], %s406
        // Predicated region
        $region65: #{tpu_custom_call.1} parent=59 // pred_check
          %p408 = pneg %p78
        $region66: #{tpu_custom_call.1} parent=59 // pred_check_branch
          %410 = sbr.rel (%p408) target = $region68
        $region67: #{tpu_custom_call.1} parent=59 // pred_region
          %412 = dma.done %s404, 128
        $region68: #{tpu_custom_call.1} parent=59 // pred_fallthru
          _
        // Predicated region
        $region69: #{tpu_custom_call.1} parent=59 // pred_check
          %p413 = pneg %p99
        $region70: #{tpu_custom_call.1} parent=59 // pred_check_branch
          %415 = sbr.rel (%p413) target = $region72
        $region71: #{tpu_custom_call.1} parent=59 // pred_region
          %417 = dma.done [#allocation6], 256
        $region72: #{tpu_custom_call.1} parent=59 // pred_fallthru
          _
        // Predicated region
        $region73: #{tpu_custom_call.1} parent=59 // pred_check
          %p418 = pneg %p141
        $region74: #{tpu_custom_call.1} parent=59 // pred_check_branch
          %420 = sbr.rel (%p418) target = $region76
        $region75: #{tpu_custom_call.1} parent=59 // pred_region
          %422 = dma.done [#allocation9], 256
        $region76: #{tpu_custom_call.1} parent=59 // pred_fallthru
          _
        // Predicated region
        $region77: #{tpu_custom_call.1} parent=59 // pred_check
          %p423 = pneg %p183
        $region78: #{tpu_custom_call.1} parent=59 // pred_check_branch
          %425 = sbr.rel (%p423) target = $region80
        $region79: #{tpu_custom_call.1} parent=59 // pred_region
          %427 = dma.done [#allocation9], 256
        $region80: #{tpu_custom_call.1} parent=59 // pred_fallthru
          _
        %s428 = sand.u32 %s39, 1
        %s429 = scalar_lea.sflag [#allocation3], %s428
        %s430 = sand.u32 %s39, 1
        %s431 = smul.addr %s430, 8
        %s432 = scalar_lea.vmem [#allocation2], %s431
        %p433 = pneg %p52
        %p434 = pneg %p49
        %s435 = sand.u32 %s31, 1
        %s436 = scalar_lea.sflag [#allocation6], %s435
        %s437 = sand.u32 %s65, 1
        %s438 = smul.addr %s437, 8
        %s439 = scalar_lea.vmem [#allocation5], %s438
        %p440 = pneg %p78
        %p441 = pneg %p75
        %p442 = pneg %p99
        %p443 = pneg %p96
        %p444 = pneg %p120
        %p445 = pneg %p117
        %p446 = pneg %p141
        %p447 = pneg %p138
        %p448 = pneg %p162
        %p449 = pneg %p159
        %p450 = pneg %p183
        %p451 = pneg %p180
        %p452 = pneg %p204
        %p453 = pneg %p201
        %p454 = pneg %p225
        %p455 = pneg %p222
        %p456 = pneg %p246
        %p457 = pneg %p243
        %p458 = pneg %p272
        %p459 = pneg %p269
        %s460 = sand.u32 %s259, 1
        %s461 = scalar_lea.sflag [#allocation4], %s460
        %s462 = sand.u32 %s259, 1
        %s463 = smul.addr %s462, 8
        %s464 = scalar_lea.vmem [#allocation11], %s463
        %v466 = vld [vmem:[%s397] sm:$0xff]
        %v467 = vld [vmem:[%s407] sm:$0xff]
        %v468 = vadd.f32 %v466, %v467
        %v469 = vpack.c.bf16 %v468, %v468
        %v470 = vld [vmem:[#allocation7] sm:$0xf]
        %v471 = vld [vmem:[#allocation7 + $0x4] sm:$0xf]
        %v472 = vld [vmem:[#allocation7 + $0x8] sm:$0xf]
        %v473 = vld [vmem:[#allocation7 + $0xc] sm:$0xf]
        %v474 = vld [vmem:[%s3] sm:$0x1]
        %v476 = vperm.slane %v474, 0
        %v482 = vunpack.c.l.b16 %v470
        %v483 = vunpack.c.l.b16 %v471
        %v484 = vunpack.c.l.b16 %v472
        %v485 = vunpack.c.l.b16 %v473
        %v486 = vpack.c.b16 %v483, %v482
        %v487 = vpack.c.b16 %v485, %v484
        %vm490 = vcmask 261120
        %v492 = vsel %vm490, %v469, 0
        %494 = vmatpush.bf16.msra.mxu0 0
        %495 = vmatpush.bf16.msra.mxu0 0
        %496 = vmatpush.bf16.msra.mxu0 0
        %497 = vmatpush.bf16.msra.mxu0 0
        %498 = vmatpush.bf16.msra.mxu0 0
        %499 = vmatpush.bf16.msra.mxu0 0
        %500 = vmatpush.bf16.msra.mxu0 %v487
        %501 = vmatpush.bf16.msra.mxu0 %v486
        %502 = vmatmul.bf16.gmra.mxu0 %v492
        %v503 = vpop.f32.mrf.mxu0
        %v504 = vadd.f32 %v476, %v503
        %v505 = vpop.f32.mrf.mxu0
        %506 = vdwg.mxu0
        %v507 = vpack.c.bf16 %v466, %v466
        %v508 = vld [vmem:[#allocation8] sm:$0xf]
        %v509 = vld [vmem:[#allocation8 + $0x4] sm:$0xf]
        %v510 = vld [vmem:[#allocation8 + $0x8] sm:$0xf]
        %v511 = vld [vmem:[#allocation8 + $0xc] sm:$0xf]
        %v512 = vld [vmem:[%s5] sm:$0x1]
        %v514 = vperm.slane %v512, 0
        %v520 = vunpack.c.l.b16 %v508
        %v521 = vunpack.c.l.b16 %v509
        %v522 = vunpack.c.l.b16 %v510
        %v523 = vunpack.c.l.b16 %v511
        %v524 = vpack.c.b16 %v521, %v520
        %v525 = vpack.c.b16 %v523, %v522
        %v529 = vsel %vm490, %v507, 0
        %531 = vmatpush.bf16.msra.mxu0 0
        %532 = vmatpush.bf16.msra.mxu0 0
        %533 = vmatpush.bf16.msra.mxu0 0
        %534 = vmatpush.bf16.msra.mxu0 0
        %535 = vmatpush.bf16.msra.mxu0 0
        %536 = vmatpush.bf16.msra.mxu0 0
        %537 = vmatpush.bf16.msra.mxu0 %v525
        %538 = vmatpush.bf16.msra.mxu0 %v524
        %539 = vmatmul.bf16.gmra.mxu0 %v529
        %v540 = vpop.f32.mrf.mxu0
        %v541 = vadd.f32 %v514, %v540
        %v542 = vpop.f32.mrf.mxu0
        %543 = vdwg.mxu0
        %v544 = vmul.f32 %v504, 0.35355338
        %546 = vrot.lane.b32.xlu0 %v544, 120
        %v547 = vpop.permute.xlu0 %546
        %549 = vrot.lane.b32.xlu0 %v544, 112
        %v550 = vpop.permute.xlu0 %549
        %552 = vrot.lane.b32.xlu0 %v544, 104
        %v553 = vpop.permute.xlu0 %552
        %556 = vrot.lane.b32.xlu0 %v504, 120
        %v557 = vpop.permute.xlu0 %556
        %559 = vrot.lane.b32.xlu0 %v504, 112
        %v560 = vpop.permute.xlu0 %559
        %562 = vrot.lane.b32.xlu0 %v504, 104
        %v563 = vpop.permute.xlu0 %562
        %566 = vrot.lane.b32.xlu0 %v541, 120
        %v567 = vpop.permute.xlu0 %566
        %569 = vrot.lane.b32.xlu0 %v541, 112
        %v570 = vpop.permute.xlu0 %569
        %572 = vrot.lane.b32.xlu0 %v541, 104
        %v573 = vpop.permute.xlu0 %572
        %v575 = vpack.c.bf16 %v544, %v544
        %v576 = vpack.c.bf16 %v547, %v547
        %v577 = vpack.c.bf16 %v550, %v550
        %v578 = vpack.c.bf16 %v553, %v553
        %v579 = vpack.c.bf16 %v504, %v504
        %v580 = vpack.c.bf16 %v557, %v557
        %v581 = vpack.c.bf16 %v560, %v560
        %v582 = vpack.c.bf16 %v563, %v563
        %v584 = vunpack.c.l.b16 %v579
        %v585 = vpack.c.b16 %v584, %v584
        %586 = vrot.lane.b32.xlu0 %v585, 96
        %v587 = vpop.permute.xlu0 %586
        %vm588 = vcmask 64512
        %v590 = vsel %vm588, %v575, 0
        %v593 = vsel %vm588, %v587, 0
        %595 = vmatpush.bf16.xpose.msra.mxu0 0
        %596 = vmatpush.bf16.xpose.msra.mxu0 0
        %597 = vmatpush.bf16.xpose.msra.mxu0 0
        %598 = vmatpush.bf16.xpose.msra.mxu0 0
        %599 = vmatpush.bf16.xpose.msra.mxu0 0
        %600 = vmatpush.bf16.xpose.msra.mxu0 0
        %601 = vmatpush.bf16.xpose.msra.mxu0 0
        %602 = vmatpush.bf16.xpose.msra.mxu0 %v593
        %603 = vmatmul.bf16.gmra.mxu0 %v590
        %v604 = vpop.f32.mrf.mxu0
        %v605 = vadd.f32 0.0, %v604
        %v606 = vpop.f32.mrf.mxu0
        %607 = vdwg.mxu0
        %v609 = vunpack.c.l.b16 %v580
        %v610 = vpack.c.b16 %v609, %v609
        %611 = vrot.lane.b32.xlu0 %v610, 96
        %v612 = vpop.permute.xlu0 %611
        %v614 = vsel %vm588, %v576, 0
        %v617 = vsel %vm588, %v612, 0
        %619 = vmatpush.bf16.xpose.msra.mxu0 0
        %620 = vmatpush.bf16.xpose.msra.mxu0 0
        %621 = vmatpush.bf16.xpose.msra.mxu0 0
        %622 = vmatpush.bf16.xpose.msra.mxu0 0
        %623 = vmatpush.bf16.xpose.msra.mxu0 0
        %624 = vmatpush.bf16.xpose.msra.mxu0 0
        %625 = vmatpush.bf16.xpose.msra.mxu0 0
        %626 = vmatpush.bf16.xpose.msra.mxu0 %v617
        %627 = vmatmul.bf16.gmra.mxu0 %v614
        %v628 = vpop.f32.mrf.mxu0
        %v629 = vadd.f32 0.0, %v628
        %v630 = vpop.f32.mrf.mxu0
        %631 = vdwg.mxu0
        %v633 = vunpack.c.l.b16 %v581
        %v634 = vpack.c.b16 %v633, %v633
        %635 = vrot.lane.b32.xlu0 %v634, 96
        %v636 = vpop.permute.xlu0 %635
        %v638 = vsel %vm588, %v577, 0
        %v641 = vsel %vm588, %v636, 0
        %643 = vmatpush.bf16.xpose.msra.mxu0 0
        %644 = vmatpush.bf16.xpose.msra.mxu0 0
        %645 = vmatpush.bf16.xpose.msra.mxu0 0
        %646 = vmatpush.bf16.xpose.msra.mxu0 0
        %647 = vmatpush.bf16.xpose.msra.mxu0 0
        %648 = vmatpush.bf16.xpose.msra.mxu0 0
        %649 = vmatpush.bf16.xpose.msra.mxu0 0
        %650 = vmatpush.bf16.xpose.msra.mxu0 %v641
        %651 = vmatmul.bf16.gmra.mxu0 %v638
        %v652 = vpop.f32.mrf.mxu0
        %v653 = vadd.f32 0.0, %v652
        %v654 = vpop.f32.mrf.mxu0
        %655 = vdwg.mxu0
        %v657 = vunpack.c.l.b16 %v582
        %v658 = vpack.c.b16 %v657, %v657
        %659 = vrot.lane.b32.xlu0 %v658, 96
        %v660 = vpop.permute.xlu0 %659
        %v662 = vsel %vm588, %v578, 0
        %v665 = vsel %vm588, %v660, 0
        %667 = vmatpush.bf16.xpose.msra.mxu0 0
        %668 = vmatpush.bf16.xpose.msra.mxu0 0
        %669 = vmatpush.bf16.xpose.msra.mxu0 0
        %670 = vmatpush.bf16.xpose.msra.mxu0 0
        %671 = vmatpush.bf16.xpose.msra.mxu0 0
        %672 = vmatpush.bf16.xpose.msra.mxu0 0
        %673 = vmatpush.bf16.xpose.msra.mxu0 0
        %674 = vmatpush.bf16.xpose.msra.mxu0 %v665
        %675 = vmatmul.bf16.gmra.mxu0 %v662
        %v676 = vpop.f32.mrf.mxu0
        %v677 = vadd.f32 0.0, %v676
        %v678 = vpop.f32.mrf.mxu0
        %679 = vdwg.mxu0
        %v680 = vsel %vm588, %v605, -inf
        %681 = vmax.xlane.f32.xlu0 %v680
        %v682 = vpop.xlane.xlu0 %681
        %v683 = vsel %vm588, %v629, -inf
        %684 = vmax.xlane.f32.xlu0 %v683
        %v685 = vpop.xlane.xlu0 %684
        %v686 = vsel %vm588, %v653, -inf
        %687 = vmax.xlane.f32.xlu0 %v686
        %v688 = vpop.xlane.xlu0 %687
        %v689 = vsel %vm588, %v677, -inf
        %690 = vmax.xlane.f32.xlu0 %v689
        %v691 = vpop.xlane.xlu0 %690
        %v692 = vsub.f32 %v605, %v682
        %v693 = vsub.f32 %v629, %v685
        %v694 = vsub.f32 %v653, %v688
        %v695 = vsub.f32 %v677, %v691
        %v696 = vmul.f32 %v692, 1.442695
        %v697 = vpow.pop %v696
        %v698 = vmul.f32 %v693, 1.442695
        %v699 = vpow.pop %v698
        %v700 = vmul.f32 %v694, 1.442695
        %v701 = vpow.pop %v700
        %v702 = vmul.f32 %v695, 1.442695
        %v703 = vpow.pop %v702
        %v704 = vsel %vm588, %v697, 0.0
        %705 = vadd.xlane.f32.xlu0 %v704
        %v706 = vpop.xlane.xlu0 %705
        %v707 = vsel %vm588, %v699, 0.0
        %708 = vadd.xlane.f32.xlu0 %v707
        %v709 = vpop.xlane.xlu0 %708
        %v710 = vsel %vm588, %v701, 0.0
        %711 = vadd.xlane.f32.xlu0 %v710
        %v712 = vpop.xlane.xlu0 %711
        %v713 = vsel %vm588, %v703, 0.0
        %714 = vadd.xlane.f32.xlu0 %v713
        %v715 = vpop.xlane.xlu0 %714
        %v716 = vrcp.pop %v706
        %v717 = vrcp.pop %v709
        %v718 = vrcp.pop %v712
        %v719 = vrcp.pop %v715
        %v720 = vmul.f32 %v697, %v716
        %v721 = vmul.f32 %v699, %v717
        %v722 = vmul.f32 %v701, %v718
        %v723 = vmul.f32 %v703, %v719
        %v724 = vpack.c.bf16 %v720, %v720
        %v725 = vpack.c.bf16 %v721, %v721
        %v726 = vpack.c.bf16 %v722, %v722
        %v727 = vpack.c.bf16 %v723, %v723
        %v728 = vpack.c.bf16 %v541, %v541
        %v729 = vpack.c.bf16 %v567, %v567
        %v730 = vpack.c.bf16 %v570, %v570
        %v731 = vpack.c.bf16 %v573, %v573
        %v733 = vsel %vm588, %v724, 0
        %vm735 = vcmask 1043456
        %v737 = vsel %vm735, %v728, 0
        %739 = vmatpush.bf16.msra.mxu0 0
        %740 = vmatpush.bf16.msra.mxu0 0
        %741 = vmatpush.bf16.msra.mxu0 0
        %742 = vmatpush.bf16.msra.mxu0 0
        %743 = vmatpush.bf16.msra.mxu0 0
        %744 = vmatpush.bf16.msra.mxu0 0
        %745 = vmatpush.bf16.msra.mxu0 0
        %746 = vmatpush.bf16.msra.mxu0 %v737
        %747 = vmatmul.bf16.gmra.mxu0 %v733
        %v748 = vpop.f32.mrf.mxu0
        %v749 = vadd.f32 0.0, %v748
        %v750 = vpop.f32.mrf.mxu0
        %751 = vdwg.mxu0
        %v753 = vsel %vm588, %v725, 0
        %v756 = vsel %vm735, %v729, 0
        %758 = vmatpush.bf16.msra.mxu0 0
        %759 = vmatpush.bf16.msra.mxu0 0
        %760 = vmatpush.bf16.msra.mxu0 0
        %761 = vmatpush.bf16.msra.mxu0 0
        %762 = vmatpush.bf16.msra.mxu0 0
        %763 = vmatpush.bf16.msra.mxu0 0
        %764 = vmatpush.bf16.msra.mxu0 0
        %765 = vmatpush.bf16.msra.mxu0 %v756
        %766 = vmatmul.bf16.gmra.mxu0 %v753
        %v767 = vpop.f32.mrf.mxu0
        %v768 = vadd.f32 0.0, %v767
        %v769 = vpop.f32.mrf.mxu0
        %770 = vdwg.mxu0
        %v772 = vsel %vm588, %v726, 0
        %v775 = vsel %vm735, %v730, 0
        %777 = vmatpush.bf16.msra.mxu0 0
        %778 = vmatpush.bf16.msra.mxu0 0
        %779 = vmatpush.bf16.msra.mxu0 0
        %780 = vmatpush.bf16.msra.mxu0 0
        %781 = vmatpush.bf16.msra.mxu0 0
        %782 = vmatpush.bf16.msra.mxu0 0
        %783 = vmatpush.bf16.msra.mxu0 0
        %784 = vmatpush.bf16.msra.mxu0 %v775
        %785 = vmatmul.bf16.gmra.mxu0 %v772
        %v786 = vpop.f32.mrf.mxu0
        %v787 = vadd.f32 0.0, %v786
        %v788 = vpop.f32.mrf.mxu0
        %789 = vdwg.mxu0
        %v791 = vsel %vm588, %v727, 0
        %v794 = vsel %vm735, %v731, 0
        %796 = vmatpush.bf16.msra.mxu0 0
        %797 = vmatpush.bf16.msra.mxu0 0
        %798 = vmatpush.bf16.msra.mxu0 0
        %799 = vmatpush.bf16.msra.mxu0 0
        %800 = vmatpush.bf16.msra.mxu0 0
        %801 = vmatpush.bf16.msra.mxu0 0
        %802 = vmatpush.bf16.msra.mxu0 0
        %803 = vmatpush.bf16.msra.mxu0 %v794
        %804 = vmatmul.bf16.gmra.mxu0 %v791
        %v805 = vpop.f32.mrf.mxu0
        %v806 = vadd.f32 0.0, %v805
        %v807 = vpop.f32.mrf.mxu0
        %808 = vdwg.mxu0
        %810 = vrot.lane.b32.xlu0 %v768, 8
        %v811 = vpop.permute.xlu0 %810
        %814 = vrot.lane.b32.xlu0 %v787, 16
        %v815 = vpop.permute.xlu0 %814
        %818 = vrot.lane.b32.xlu0 %v806, 24
        %v819 = vpop.permute.xlu0 %818
        %v821 = vsel %vm588, %v749, %v811
        %vm822 = vcmask 130048
        %v823 = vsel %vm822, %v821, %v815
        %vm824 = vcmask 195584
        %v825 = vsel %vm824, %v823, %v819
        %v826 = vpack.c.bf16 %v825, %v825
        %v827 = vld [vmem:[#allocation10] sm:$0xf]
        %v828 = vld [vmem:[#allocation10 + $0x4] sm:$0xf]
        %v829 = vld [vmem:[#allocation10 + $0x8] sm:$0xf]
        %v830 = vld [vmem:[#allocation10 + $0xc] sm:$0xf]
        %v831 = vld [vmem:[%s7] sm:$0x1]
        %v833 = vperm.slane %v831, 0
        %v839 = vunpack.c.l.b16 %v827
        %v840 = vunpack.c.l.b16 %v828
        %v841 = vunpack.c.l.b16 %v829
        %v842 = vunpack.c.l.b16 %v830
        %v843 = vpack.c.b16 %v840, %v839
        %v844 = vpack.c.b16 %v842, %v841
        %v848 = vsel %vm490, %v826, 0
        %850 = vmatpush.bf16.msra.mxu0 0
        %851 = vmatpush.bf16.msra.mxu0 0
        %852 = vmatpush.bf16.msra.mxu0 0
        %853 = vmatpush.bf16.msra.mxu0 0
        %854 = vmatpush.bf16.msra.mxu0 0
        %855 = vmatpush.bf16.msra.mxu0 0
        %856 = vmatpush.bf16.msra.mxu0 %v844
        %857 = vmatpush.bf16.msra.mxu0 %v843
        %858 = vmatmul.bf16.gmra.mxu0 %v848
        %v859 = vpop.f32.mrf.mxu0
        %v860 = vadd.f32 %v833, %v859
        %v861 = vpop.f32.mrf.mxu0
        %862 = vdwg.mxu0
        %v863 = vadd.f32 %v466, %v860
        %v864 = vld [vmem:[%s8] sm:$0x1]
        %v865 = vld [vmem:[%s9] sm:$0x1]
        %v866 = vsel %vm490, %v863, 0.0
        %867 = vadd.xlane.f32.xlu0 %v866
        %v868 = vpop.xlane.xlu0 %867
        %v869 = vrcp.pop 32.0
        %v870 = vmul.f32 32.0, %v869
        %v871 = vsub.f32 1.0, %v870
        %v872 = vmul.f32 %v869, %v871
        %v873 = vadd.f32 %v869, %v872
        %vm874 = vweird.f32 %v869
        %v875 = vsel %vm874, %v869, %v873
        %v876 = vmul.f32 %v868, %v875
        %v877 = vsub.f32 %v863, %v876
        %v878 = vmul.f32 %v877, %v877
        %v879 = vsel %vm490, %v878, 0.0
        %880 = vadd.xlane.f32.xlu0 %v879
        %v881 = vpop.xlane.xlu0 %880
        %v882 = vmul.f32 %v881, %v875
        %v883 = vadd.f32 %v882, 1e-05
        %v884 = vrsqrt.pop %v883
        %v885 = vmul.f32 %v884, %v883
        %v886 = vmul.f32 %v885, %v884
        %v887 = vmul.f32 0.5, %v886
        %v888 = vsub.f32 1.5, %v887
        %v889 = vmul.f32 %v884, %v888
        %vm890 = vweird.f32 %v883
        %vm891 = vweird.f32 %v884
        %vm892 = vmor %vm890, %vm891
        %v893 = vsel %vm892, %v884, %v889
        %v894 = vmul.f32 %v877, %v893
        %v896 = vperm.slane %v864, 0
        %v898 = vmul.f32 %v894, %v896
        %v900 = vperm.slane %v865, 0
        %v902 = vadd.f32 %v898, %v900
        %903 = vst.msk [vmem:[%s464] sm:$0xff] %vm490, %v902
        %s904 = sand.u32 %s259, 1
        %s905 = scalar_lea.sflag [#allocation4], %s904
        %s906 = sand.u32 %s259, 1
        %s907 = smul.addr %s906, 8
        %s908 = scalar_lea.vmem [#allocation11], %s907
        // Predicated region
        $region81: #{tpu_custom_call.1} parent=59 // pred_check
          %p909 = pneg %p269
        $region82: #{tpu_custom_call.1} parent=59 // pred_check_branch
          %911 = sbr.rel (%p909) target = $region84
        $region83: #{tpu_custom_call.1} parent=59 // pred_region
          %913 = vsyncadd %s905, 0
          %s914 = smul.addr %s31, 8
          %s915 = scalar_lea.hbm %s10, %s914
          %s917 = sshll.u32 %s908, 4
          %s918 = int_to_ptr.vmem [resolvable:$true] %s917
          %s919 = sshll.u32 %s915, 4
          %s920 = int_to_ptr.hbm [resolvable:$true] %s919
          %922 = dma.vmem_to_hbm [thread:$0]  %s918, 128, %s920, %s905
        $region84: #{tpu_custom_call.1} parent=59 // pred_fallthru
          _
      $region60: #{tpu_custom_call.1} parent=5 // pred_fallthru
        _
      %p923 = scmp.le.s32.totalorder 2, %s26
      // Predicated region
      $region85: #{tpu_custom_call.1} parent=5 // pred_check
        %p924 = pneg %p923
      $region86: #{tpu_custom_call.1} parent=5 // pred_check_branch
        %926 = sbr.rel (%p924) target = $region88
      $region87: #{tpu_custom_call.1} parent=5 // pred_region
        %s927 = ssub.s32 %s26, 2
        // Predicated region
        $region89: #{tpu_custom_call.1} parent=87 // pred_check
          %p928 = pneg %p275
        $region90: #{tpu_custom_call.1} parent=87 // pred_check_branch
          %930 = sbr.rel (%p928) target = $region92
        $region91: #{tpu_custom_call.1} parent=87 // pred_region
          %s931 = sand.u32 %s260, 1
          %s932 = scalar_lea.sflag [#allocation4], %s931
          %s933 = sand.u32 %s260, 1
          %s934 = smul.addr %s933, 8
          %s935 = scalar_lea.vmem [#allocation11], %s934
          %937 = dma.done %s932, 128
        $region92: #{tpu_custom_call.1} parent=87 // pred_fallthru
          _
      $region88: #{tpu_custom_call.1} parent=5 // pred_fallthru
        _
    $region6: #{tpu_custom_call.1} parent=1 // loop_footer
      %s30 = sadd.s32 1, %s26
    $region7: #{tpu_custom_call.1} parent=1 // loop_footer_branch
      %25 = sbr.rel target = $region3
    $region8: #{tpu_custom_call.1} parent=1 // loop_exit
      _
    %938 = vsyncpa [#allocation3], 1
    %s939 = scalar_lea.sflag [#allocation3], 1
    %940 = vsyncpa %s939, 1
    %941 = vsyncpa [#allocation6], 1
    %s942 = scalar_lea.sflag [#allocation6], 1
    %943 = vsyncpa %s942, 1
    %944 = vsyncpa [#allocation9], 1
    %945 = vsyncpa [#allocation4], 1
    %s946 = scalar_lea.sflag [#allocation4], 1
    %947 = vsyncpa %s946, 1

</llo_original>
